<compile_context>
chip_gen: v7x
topology: tpu7x:2x2x1
jax: 0.10.0
libtpu: 0.0.40
codegen_flags: <defaults>
</compile_context>

<pallas_src>
import jax
import jax.numpy as jnp
from jax.experimental import pallas as pl
from jax.experimental.pallas import tpu as pltpu


# ----------------------------- kernels ------------------------------------- #

def _fused_kernel(x_ref, p_ref, out_ref):
    # x_ref: (tb, cols), p_ref: (cols, cols) resident, out: (tb, cols)
    out_ref[...] = jnp.dot(
        x_ref[...], p_ref[...], preferred_element_type=jnp.float32
    ).astype(out_ref.dtype)


def _two_matmul_kernel(x_ref, w1_ref, v_ref, out_ref):
    # Fallback for large fea_dim: keep the (tb, n_base) intermediate.
    # No explicit astype on v_ref — mixed-precision accumulation is handled by
    # preferred_element_type (perf review: avoid re-materializing V each step).
    weights = jnp.dot(x_ref[...], w1_ref[...], preferred_element_type=jnp.float32)
    out_ref[...] = jnp.dot(
        weights, v_ref[...], preferred_element_type=jnp.float32
    ).astype(out_ref.dtype)


# ----------------------------- helpers -------------------------------------- #

def _vmem_capacity_bytes():
    """Per-core VMEM capacity (128 MiB on v5e/v6e, 64 MiB on v7x)."""
    try:
        return int(pltpu.get_tpu_info().vmem_capacity_bytes)
    except Exception:
        return 64 << 20  # conservative (v7x per-core)


def _should_fold(fea_dim, itemsize):
    # Roofline: folding turns 4*b*f*n_base flops into 2*b*f^2 and adds f/256
    # (v6e/v7x) or f/128 (v5e) MXU K-chunks per output.  Fold only while the
    # folded matmul stays HBM-bound on every generation: fea_dim <= ~256 for
    # f32, ~2x higher for bf16/f16 (MXU-native dtype).
    limit = 512 if itemsize <= 2 else 256
    return fea_dim <= limit


def _resident_spec(shape, single_buffer):
    """BlockSpec for an operand whose block index never changes."""
    index_map = lambda i: (0,) * len(shape)
    if single_buffer:
        # One VMEM copy instead of two for a block that never changes.
        return pl.BlockSpec(shape, index_map, pipeline_mode=pl.Buffered(1))
    return pl.BlockSpec(shape, index_map)


def _run_pallas(kernel, *, out_shape, grid, lead_spec, resident_shapes, out_spec,
                compiler_params, cost, args):
    """pallas_call with single-buffered residents; falls back to the default
    double-buffered specs if pipeline_mode=pl.Buffered(1) is rejected."""
    last_err = None
    for single in (True, False):
        try:
            in_specs = [lead_spec] + [_resident_spec(s, single) for s in resident_shapes]
            return pl.pallas_call(
                kernel,
                out_shape=out_shape,
                grid=grid,
                in_specs=in_specs,
                out_specs=out_spec,
                compiler_params=compiler_params,
                cost_estimate=cost,
            )(*args)
        except Exception as e:  # pragma: no cover - pipeline_mode fallback
            last_err = e
    raise last_err


def _pick_batch_tile(batch, cols, *, itemsize, tile_budget, quantum=8):
    """Batch-row tile that (a) is a multiple of `quantum` (or the full extent),
    (b) keeps the double-buffered x/out tiles inside `tile_budget`, (c) gives
    >= 2 grid steps for large batches so DMA/compute pipelining engages, and
    (d) prefers an EVEN step count (v7x megacore balance)."""
    per_row = 4 * cols * itemsize                     # 2x (x tile + out tile)
    max_tb = max(quantum, (tile_budget // per_row) // quantum * quantum)
    if batch <= min(max_tb, 512):
        return batch                                  # single full tile
    tb = min(1024, max_tb, -(-batch // 2))            # at least 2 grid steps
    tb = max(quantum, tb // quantum * quantum)
    tb = min(tb, batch)
    steps = -(-batch // tb)
    if steps > 1 and steps % 2 == 1:
        # Shrink a little so the step count becomes even (2-TC v7x sharding).
        for t in range(tb - quantum, max(quantum, tb // 2) - 1, -quantum):
            if (-(-batch // t)) % 2 == 0:
                tb = t
                break
    return tb


# ----------------------------- wrapper -------------------------------------- #

def spurious_vectors_forward(x, spu_vecs, *, tb=None, fold=None):
    """Forward pass of SpuriousVectors.

    Args:
      x:        (batch, fea_dim)
      spu_vecs: (n_base, fea_dim)
    Returns:
      delta_vecs: (batch, fea_dim), same dtype as x.
    """
    batch, fea_dim = x.shape
    n_base, fd2 = spu_vecs.shape
    assert fd2 == fea_dim
    itemsize = x.dtype.itemsize

    # ---- glue: tiny (n_base x n_base) Gram solve, no clean Pallas equivalent ----
    # TODO(synk): the small dense linear solve stays in plain JAX; it is
    # O(n_base^2 * fea_dim) and negligible next to the batched matmuls.
    # NOTE: solve() on the symmetric Gram matrix replaces the reference's
    # explicit inv(); numerically different (better conditioned), same math.
    v32 = spu_vecs.astype(jnp.float32)
    gram = v32 @ v32.T + 1.0                      # scalar broadcast add, as in torch
    m = jnp.linalg.solve(gram, v32)               # = inv(A) @ V   (n_base, fea_dim)

    vmem_cap = _vmem_capacity_bytes()
    vmem_limit = max(32 << 20, min((vmem_cap * 3) // 4, 96 << 20))
    compiler_params = pltpu.CompilerParams(
        dimension_semantics=("parallel",),        # batch tiles independent -> megacore
        vmem_limit_bytes=vmem_limit,
    )

    if fold is None:
        fold = _should_fold(fea_dim, itemsize)

    if fold:
        # P = V.T @ inv(A) @ V  (A symmetric)  ->  delta = x @ P.
        # P stays float32 (precision note from review; VMEM cost is tiny here).
        p = m.T @ v32                             # (fea_dim, fea_dim), f32

        rep = 128 // fea_dim if (fea_dim < 128 and 128 % fea_dim == 0) else 1
        if rep > 1 and batch % rep == 0:
            # Block-diagonal-P: lane-dense 128-wide tiles, no extra HBM traffic.
            p_run = jnp.kron(jnp.eye(rep, dtype=p.dtype), p)       # (128, 128)
            x_run = x.reshape(batch // rep, rep * fea_dim)         # free reshape
        else:
            rep = 1
            p_run, x_run = p, x
        rows, cols = x_run.shape

        p_bytes = int(p_run.size) * p_run.dtype.itemsize
        tile_budget = max(1 << 20, vmem_limit - 2 * p_bytes - (4 << 20))
        if tb is not None:
            tb_run = tb if rep == 1 else max(8, (tb // rep) // 8 * 8)
            tb_run = min(tb_run, rows)
        else:
            tb_run = _pick_batch_tile(rows, cols, itemsize=itemsize,
                                      tile_budget=tile_budget)
        grid = (pl.cdiv(rows, tb_run),)
        cost = pl.CostEstimate(
            flops=2 * batch * fea_dim * fea_dim,
            transcendentals=0,
            bytes_accessed=2 * batch * fea_dim * itemsize + p_bytes,
        )
        out = _run_pallas(
            _fused_kernel,
            out_shape=jax.ShapeDtypeStruct((rows, cols), x.dtype),
            grid=grid,
            lead_spec=pl.BlockSpec((tb_run, cols), lambda i: (i, 0)),
            resident_shapes=[(cols, cols)],
            out_spec=pl.BlockSpec((tb_run, cols), lambda i: (i, 0)),
            compiler_params=compiler_params,
            cost=cost,
            args=(x_run, p_run),
        )
        return out.reshape(batch, fea_dim)

    # ---- two-matmul path: large fea_dim, stays on the HBM-bound floor ----
    w1 = m.T                                      # (fea_dim, n_base) = V.T @ inv(A), f32
    v = spu_vecs
    resid_bytes = 2 * (int(w1.size) * w1.dtype.itemsize + int(v.size) * v.dtype.itemsize)
    tile_budget = max(1 << 20, vmem_limit - resid_bytes - (4 << 20))
    if tb is None:
        tb = _pick_batch_tile(batch, fea_dim, itemsize=itemsize,
                              tile_budget=tile_budget)
    tb = min(tb, batch)
    grid = (pl.cdiv(batch, tb),)
    cost = pl.CostEstimate(
        flops=4 * batch * fea_dim * n_base,
        transcendentals=0,
        bytes_accessed=(2 * batch * fea_dim + 2 * fea_dim * n_base) * itemsize,
    )
    return _run_pallas(
        _two_matmul_kernel,
        out_shape=jax.ShapeDtypeStruct((batch, fea_dim), x.dtype),
        grid=grid,
        lead_spec=pl.BlockSpec((tb, fea_dim), lambda i: (i, 0)),
        resident_shapes=[(fea_dim, n_base), (n_base, fea_dim)],
        out_spec=pl.BlockSpec((tb, fea_dim), lambda i: (i, 0)),
        compiler_params=compiler_params,
        cost=cost,
        args=(x, w1, v),
    )


# ----------------------------- reference / test ----------------------------- #

def _reference_forward(x, spu_vecs):
    # Mirrors the PyTorch module exactly (explicit inv).
    v = spu_vecs
    w = jnp.linalg.inv(v @ v.T + 1.0) @ v @ x.T
    weights = w.T
    return weights @ v


if __name__ == "__main__":
    key = jax.random.PRNGKey(0)

    def run_case(n_base, fea_dim, batch, **kw):
        k_v, k_x = jax.random.split(jax.random.fold_in(key, fea_dim * 10000 + batch))
        # nn.Parameter(torch.normal(0, 0.05, size=(n_base, fea_dim))) analogue
        spu_vecs = 0.05 * jax.random.normal(k_v, (n_base, fea_dim), dtype=jnp.float32)
        x = jax.random.normal(k_x, (batch, fea_dim), dtype=jnp.float32)

        delta = jax.block_until_ready(spurious_vectors_forward(x, spu_vecs, **kw))
        ref = _reference_forward(x, spu_vecs)
        assert delta.shape == (batch, fea_dim)
        assert jnp.allclose(delta, ref, atol=1e-4, rtol=1e-4), (
            "mismatch vs reference", n_base, fea_dim, batch)

    # 1) Module-scale small case: fold + block-diagonal-P (rep=4), single tile.
    run_case(4, 32, 8)
    # 2) fold + block-diagonal-P, 80 lane-dense rows.
    run_case(4, 32, 320)
    # 3) batch not a multiple of rep -> plain fused path (full-array block).
    run_case(4, 32, 10)
    # 4) fold path, fea_dim already lane-dense (no blockdiag needed).
    run_case(4, 128, 48)
    # 5) Two-matmul fallback forced, multi-tile grid with a partial last tile.
    run_case(4, 256, 272, tb=128, fold=False)
    # 6) fea_dim above the roofline fold threshold -> auto two-matmul path.
    run_case(4, 512, 64)

    print("KERNEL_OK")
</pallas_src>

<mosaic_0001>
module attributes {stable_mosaic.version = 11 : i64} {
  func.func @_fused_kernel(%arg0: i32, %arg1: memref<2x128xf32, #tpu.memory_space<vmem>>, %arg2: memref<128x128xf32, #tpu.memory_space<vmem>>, %arg3: memref<2x128xf32, #tpu.memory_space<vmem>>) attributes {dimension_semantics = [#tpu.dimension_semantics<parallel>], iteration_bounds = array<i64: 1>, scalar_prefetch = 0 : i64, scratch_operands = 0 : i64, tpu.core_type = #tpu.core_type<tc>, window_params = [{transform_indices = @transform_0, window_bounds = array<i64: 2, 128>}, {pipeline_mode = #tpu.pipeline_mode<synchronous>, transform_indices = @transform_1, window_bounds = array<i64: 128, 128>}, {transform_indices = @transform_2, window_bounds = array<i64: 2, 128>}]} {
    %c0 = arith.constant 0 : index
    %c0_0 = arith.constant 0 : index
    %0 = vector.load %arg1[%c0, %c0_0] : memref<2x128xf32, #tpu.memory_space<vmem>>, vector<2x128xf32>
    %c0_1 = arith.constant 0 : index
    %c0_2 = arith.constant 0 : index
    %1 = vector.load %arg2[%c0_1, %c0_2] : memref<128x128xf32, #tpu.memory_space<vmem>>, vector<128x128xf32>
    %cst = arith.constant dense<0.000000e+00> : vector<2x128xf32>
    %2 = tpu.matmul %0, %1, %cst {dimension_numbers = #tpu.dot_dimension_numbers<[1], [0], [0], [1], [0, 0, 1, 1], [], []>} : vector<2x128xf32>, vector<128x128xf32>, vector<2x128xf32> -> vector<2x128xf32>
    %c0_3 = arith.constant 0 : index
    %c0_4 = arith.constant 0 : index
    %3 = vector.load %arg3[%c0_3, %c0_4] : memref<2x128xf32, #tpu.memory_space<vmem>>, vector<2x128xf32>
    tpu.vector_store %arg3[%c0_3, %c0_4], %2 {strides = array<i32>} : memref<2x128xf32, #tpu.memory_space<vmem>>, vector<2x128xf32>,
    return
  }
  func.func @transform_0(%arg0: i32) -> (i32, i32) {
    %c0_i32 = arith.constant 0 : i32
    %c0_i32_0 = arith.constant 0 : i32
    return %arg0, %c0_i32 : i32, i32
  }
  func.func @transform_1(%arg0: i32) -> (i32, i32) {
    %c0_i32 = arith.constant 0 : i32
    %c0_i32_0 = arith.constant 0 : i32
    %c0_i32_1 = arith.constant 0 : i32
    return %c0_i32, %c0_i32_0 : i32, i32
  }
  func.func @transform_2(%arg0: i32) -> (i32, i32) {
    %c0_i32 = arith.constant 0 : i32
    %c0_i32_0 = arith.constant 0 : i32
    return %arg0, %c0_i32 : i32, i32
  }
}

module attributes {stable_mosaic.version = 11 : i64} {
  func.func @_fused_kernel(%arg0: i32, %arg1: memref<2x128xf32, #tpu.memory_space<vmem>>, %arg2: memref<128x128xf32, #tpu.memory_space<vmem>>, %arg3: memref<2x128xf32, #tpu.memory_space<vmem>>) attributes {dimension_semantics = [#tpu.dimension_semantics<parallel>], iteration_bounds = array<i64: 1>, scalar_prefetch = 0 : i64, scratch_operands = 0 : i64, tpu.core_type = #tpu.core_type<tc>, window_params = [{transform_indices = @transform_0, window_bounds = array<i64: 2, 128>}, {pipeline_mode = #tpu.pipeline_mode<synchronous>, transform_indices = @transform_1, window_bounds = array<i64: 128, 128>}, {transform_indices = @transform_2, window_bounds = array<i64: 2, 128>}]} {
    %c0 = arith.constant 0 : index
    %c0_0 = arith.constant 0 : index
    %0 = vector.load %arg1[%c0, %c0_0] : memref<2x128xf32, #tpu.memory_space<vmem>>, vector<2x128xf32>
    %c0_1 = arith.constant 0 : index
    %c0_2 = arith.constant 0 : index
    %1 = vector.load %arg2[%c0_1, %c0_2] : memref<128x128xf32, #tpu.memory_space<vmem>>, vector<128x128xf32>
    %cst = arith.constant dense<0.000000e+00> : vector<2x128xf32>
    %2 = tpu.matmul %0, %1, %cst {dimension_numbers = #tpu.dot_dimension_numbers<[1], [0], [0], [1], [0, 0, 1, 1], [], []>} : vector<2x128xf32>, vector<128x128xf32>, vector<2x128xf32> -> vector<2x128xf32>
    %c0_3 = arith.constant 0 : index
    %c0_4 = arith.constant 0 : index
    %3 = vector.load %arg3[%c0_3, %c0_4] : memref<2x128xf32, #tpu.memory_space<vmem>>, vector<2x128xf32>
    tpu.vector_store %arg3[%c0_3, %c0_4], %2 {strides = array<i32>} : memref<2x128xf32, #tpu.memory_space<vmem>>, vector<2x128xf32>,
    return
  }
  func.func @transform_0(%arg0: i32) -> (i32, i32) {
    %c0_i32 = arith.constant 0 : i32
    %c0_i32_0 = arith.constant 0 : i32
    return %arg0, %c0_i32 : i32, i32
  }
  func.func @transform_1(%arg0: i32) -> (i32, i32) {
    %c0_i32 = arith.constant 0 : i32
    %c0_i32_0 = arith.constant 0 : i32
    %c0_i32_1 = arith.constant 0 : i32
    return %c0_i32, %c0_i32_0 : i32, i32
  }
  func.func @transform_2(%arg0: i32) -> (i32, i32) {
    %c0_i32 = arith.constant 0 : i32
    %c0_i32_0 = arith.constant 0 : i32
    return %arg0, %c0_i32 : i32, i32
  }
}

</mosaic_0001>

<llo_original>
// kernel: tpu_custom_call.1
$region0: #{tpu_custom_call.1}
  #allocation0 [shape = 'u32[]', space=smem, size = 0x4, offset = 0x4, fixed_abs, tag = 'smem constant byte address 0x4 - core index']
  #allocation1 [shape = 'u32[144,128]{1,0:T(1,128)}', space=vmem, size = 0x12000, scoped, tag = 'internal scratch']
  %s0 = inlined_call_operand.hbm [shape: f32[2,128], index: 0, kind: input, shape index: {}]
  %s1 = inlined_call_operand.hbm [shape: f32[128,128], index: 1, kind: input, shape index: {}]
  %s2 = inlined_call_operand.hbm [shape: f32[2,128], index: 2, kind: output, shape index: {}]
  %s3 = sld [smem:[#allocation0]]
  $region26: #{tpu_custom_call.1} parent=0
    _
  %s5 = ssub.s32 1, %s3
  %s6 = scalar_select 0, %s5, %s3
  $region1: #{tpu_custom_call.1} parent=0
    #allocation2 [shape = 'u8[1024]{0}', space=vmem, size = 0x400, scoped, tag = 'input window, operand 0, single buffered']
    #allocation3 [shape = 's32[1]{0}', space=sflag, size = 0x4, scoped, tag = 'scoped memory for tpu_custom_call.1']
    #allocation4 [shape = 's32[1]{0}', space=sflag, size = 0x4, scoped, tag = 'scoped memory for tpu_custom_call.1']
    #allocation5 [shape = 'u8[65536]{0}', space=vmem, size = 0x10000, scoped, tag = 'input window, operand 1, single buffered']
    #allocation6 [shape = 's32[1]{0}', space=sflag, size = 0x4, scoped, tag = 'scoped memory for tpu_custom_call.1']
    #allocation7 [shape = 'u8[1024]{0}', space=vmem, size = 0x400, scoped, tag = 'output window, operand 0, single buffered']
    %7 = vsyncpa [#allocation3], 0
    %8 = vsyncpa [#allocation6], 0
    %9 = vsyncpa [#allocation4], 0
    // Predicated region
    $region2: #{tpu_custom_call.1} parent=1 // pred_check
      _
    $region3: #{tpu_custom_call.1} parent=1 // pred_check_branch
      %11 = sbr.rel (0) target = $region5
    $region4: #{tpu_custom_call.1} parent=1 // pred_region
      %s13 = ssub.s32 32, 32
      %14 = vsyncadd [#allocation3], %s13
      %s16 = sshll.u32 [#allocation2], 4
      %s17 = int_to_ptr.vmem [resolvable:$true] %s16
      %19 = dma.hbm_to_vmem [thread:$0]  %s0, 32, %s17, [#allocation3]
    $region5: #{tpu_custom_call.1} parent=1 // pred_fallthru
      _
    // Predicated region
    $region6: #{tpu_custom_call.1} parent=1 // pred_check
      _
    $region7: #{tpu_custom_call.1} parent=1 // pred_check_branch
      %21 = sbr.rel (0) target = $region9
    $region8: #{tpu_custom_call.1} parent=1 // pred_region
      %s23 = ssub.s32 2048, 2048
      %24 = vsyncadd [#allocation6], %s23
      %s25 = sshll.u32 [#allocation5], 4
      %s26 = int_to_ptr.vmem [resolvable:$true] %s25
      %31 = dma.hbm_to_vmem [thread:$0]  %s1, 2048, %s26, [#allocation6], 128, 128, 8
    $region9: #{tpu_custom_call.1} parent=1 // pred_fallthru
      _
    // Predicated region
    $region10: #{tpu_custom_call.1} parent=1 // pred_check
      _
    $region11: #{tpu_custom_call.1} parent=1 // pred_check_branch
      %33 = sbr.rel (0) target = $region13
    $region12: #{tpu_custom_call.1} parent=1 // pred_region
      %34 = dma.done [#allocation3], 32
    $region13: #{tpu_custom_call.1} parent=1 // pred_fallthru
      _
    // Predicated region
    $region14: #{tpu_custom_call.1} parent=1 // pred_check
      _
    $region15: #{tpu_custom_call.1} parent=1 // pred_check_branch
      %36 = sbr.rel (0) target = $region17
    $region16: #{tpu_custom_call.1} parent=1 // pred_region
      %37 = dma.done [#allocation6], 2048
    $region17: #{tpu_custom_call.1} parent=1 // pred_fallthru
      _
    %v38 = vld [vmem:[#allocation2] sm:$0x3]
    %v39 = vld [vmem:[#allocation5] sm:$0xff]
    %v40 = vld [vmem:[#allocation5 + $0x8] sm:$0xff]
    %v41 = vld [vmem:[#allocation5 + $0x10] sm:$0xff]
    %v42 = vld [vmem:[#allocation5 + $0x18] sm:$0xff]
    %v43 = vld [vmem:[#allocation5 + $0x20] sm:$0xff]
    %v44 = vld [vmem:[#allocation5 + $0x28] sm:$0xff]
    %v45 = vld [vmem:[#allocation5 + $0x30] sm:$0xff]
    %v46 = vld [vmem:[#allocation5 + $0x38] sm:$0xff]
    %v47 = vld [vmem:[#allocation5 + $0x40] sm:$0xff]
    %v48 = vld [vmem:[#allocation5 + $0x48] sm:$0xff]
    %v49 = vld [vmem:[#allocation5 + $0x50] sm:$0xff]
    %v50 = vld [vmem:[#allocation5 + $0x58] sm:$0xff]
    %v51 = vld [vmem:[#allocation5 + $0x60] sm:$0xff]
    %v52 = vld [vmem:[#allocation5 + $0x68] sm:$0xff]
    %v53 = vld [vmem:[#allocation5 + $0x70] sm:$0xff]
    %v54 = vld [vmem:[#allocation5 + $0x78] sm:$0xff]
    %55 = vmatprep.subr.mxu0 0.0
    %56 = vmatpush1.msra.mxu0 %v39
    %57 = vmatprep.subr.mxu0 0.0
    %58 = vmatpush1.msra.mxu0 %v40
    %59 = vmatprep.subr.mxu0 0.0
    %60 = vmatpush1.msra.mxu0 %v41
    %61 = vmatprep.subr.mxu0 0.0
    %62 = vmatpush1.msra.mxu0 %v42
    %63 = vmatprep.subr.mxu0 0.0
    %64 = vmatpush1.msra.mxu0 %v43
    %65 = vmatprep.subr.mxu0 0.0
    %66 = vmatpush1.msra.mxu0 %v44
    %67 = vmatprep.subr.mxu0 0.0
    %68 = vmatpush1.msra.mxu0 %v45
    %69 = vmatprep.subr.mxu0 0.0
    %70 = vmatpush1.msra.mxu0 %v46
    %71 = vmatprep.subr.mxu0 0.0
    %72 = vmatpush1.msra.mxu0 %v47
    %73 = vmatprep.subr.mxu0 0.0
    %74 = vmatpush1.msra.mxu0 %v48
    %75 = vmatprep.subr.mxu0 0.0
    %76 = vmatpush1.msra.mxu0 %v49
    %77 = vmatprep.subr.mxu0 0.0
    %78 = vmatpush1.msra.mxu0 %v50
    %79 = vmatprep.subr.mxu0 0.0
    %80 = vmatpush1.msra.mxu0 %v51
    %81 = vmatprep.subr.mxu0 0.0
    %82 = vmatpush1.msra.mxu0 %v52
    %83 = vmatprep.subr.mxu0 0.0
    %84 = vmatpush1.msra.mxu0 %v53
    %85 = vmatprep.subr.mxu0 0.0
    %86 = vmatpush1.msra.mxu0 %v54
    %87 = vmatprep.subr.mxu0 0.0
    %88 = vmatpush1.msra.mxu0 0.0
    %89 = vmatprep.subr.mxu0 0.0
    %90 = vmatpush1.msra.mxu0 0.0
    %91 = vmatprep.subr.mxu0 0.0
    %92 = vmatpush1.msra.mxu0 0.0
    %93 = vmatprep.subr.mxu0 0.0
    %94 = vmatpush1.msra.mxu0 0.0
    %95 = vmatprep.subr.mxu0 0.0
    %96 = vmatpush1.msra.mxu0 0.0
    %97 = vmatprep.subr.mxu0 0.0
    %98 = vmatpush1.msra.mxu0 0.0
    %99 = vmatprep.subr.mxu0 0.0
    %100 = vmatpush1.msra.mxu0 0.0
    %101 = vmatprep.subr.mxu0 0.0
    %102 = vmatpush1.msra.mxu0 0.0
    %103 = vmatprep.subr.mxu0 0.0
    %104 = vmatpush1.msra.mxu0 0.0
    %105 = vmatprep.subr.mxu0 0.0
    %106 = vmatpush1.msra.mxu0 0.0
    %107 = vmatprep.subr.mxu0 0.0
    %108 = vmatpush1.msra.mxu0 0.0
    %109 = vmatprep.subr.mxu0 0.0
    %110 = vmatpush1.msra.mxu0 0.0
    %111 = vmatprep.subr.mxu0 0.0
    %112 = vmatpush1.msra.mxu0 0.0
    %113 = vmatprep.subr.mxu0 0.0
    %114 = vmatpush1.msra.mxu0 0.0
    %115 = vmatprep.subr.mxu0 0.0
    %116 = vmatpush1.msra.mxu0 0.0
    %117 = vmatprep.subr.mxu0 0.0
    %118 = vmatpush1.msra.mxu0 0.0
    %119 = vmatprep.mubr.f32.mxu0 0.0
    %120 = vmatmul.mubr.f32.gmra.mrb[0].mxu0 %v38
    %v121 = vpop.f32.mrb[0].mxu0
    %v122 = vadd.f32 0.0, %v121
    %v123 = vpop.f32.mrb[0].mxu0
    %124 = vdwg.mxu0
    %125 = vst [vmem:[#allocation7] sm:$0x3] %v122
    // Predicated region
    $region18: #{tpu_custom_call.1} parent=1 // pred_check
      _
    $region19: #{tpu_custom_call.1} parent=1 // pred_check_branch
      %127 = sbr.rel (0) target = $region21
    $region20: #{tpu_custom_call.1} parent=1 // pred_region
      %s129 = ssub.s32 32, 32
      %130 = vsyncadd [#allocation4], %s129
      %s132 = sshll.u32 [#allocation7], 4
      %s133 = int_to_ptr.vmem [resolvable:$true] %s132
      %135 = dma.vmem_to_hbm [thread:$0]  %s133, 32, %s2, [#allocation4]
    $region21: #{tpu_custom_call.1} parent=1 // pred_fallthru
      _
    // Predicated region
    $region22: #{tpu_custom_call.1} parent=1 // pred_check
      _
    $region23: #{tpu_custom_call.1} parent=1 // pred_check_branch
      %137 = sbr.rel (0) target = $region25
    $region24: #{tpu_custom_call.1} parent=1 // pred_region
      %138 = dma.done [#allocation4], 32
    $region25: #{tpu_custom_call.1} parent=1 // pred_fallthru
      _
    %139 = vsyncpa [#allocation3], 1
    %140 = vsyncpa [#allocation6], 1
    %141 = vsyncpa [#allocation4], 1

// kernel: tpu_custom_call.1
$region0: #{tpu_custom_call.1}
  #allocation0 [shape = 'u32[]', space=smem, size = 0x4, offset = 0x4, fixed_abs, tag = 'smem constant byte address 0x4 - core index']
  #allocation1 [shape = 'u32[144,128]{1,0:T(1,128)}', space=vmem, size = 0x12000, scoped, tag = 'internal scratch']
  %s0 = inlined_call_operand.hbm [shape: f32[2,128], index: 0, kind: input, shape index: {}]
  %s1 = inlined_call_operand.hbm [shape: f32[128,128], index: 1, kind: input, shape index: {}]
  %s2 = inlined_call_operand.hbm [shape: f32[2,128], index: 2, kind: output, shape index: {}]
  %s3 = sld [smem:[#allocation0]]
  $region26: #{tpu_custom_call.1} parent=0
    _
  %s5 = ssub.s32 1, %s3
  %s6 = scalar_select 0, %s5, %s3
  $region1: #{tpu_custom_call.1} parent=0
    #allocation2 [shape = 'u8[1024]{0}', space=vmem, size = 0x400, scoped, tag = 'input window, operand 0, single buffered']
    #allocation3 [shape = 's32[1]{0}', space=sflag, size = 0x4, scoped, tag = 'scoped memory for tpu_custom_call.1']
    #allocation4 [shape = 's32[1]{0}', space=sflag, size = 0x4, scoped, tag = 'scoped memory for tpu_custom_call.1']
    #allocation5 [shape = 'u8[65536]{0}', space=vmem, size = 0x10000, scoped, tag = 'input window, operand 1, single buffered']
    #allocation6 [shape = 's32[1]{0}', space=sflag, size = 0x4, scoped, tag = 'scoped memory for tpu_custom_call.1']
    #allocation7 [shape = 'u8[1024]{0}', space=vmem, size = 0x400, scoped, tag = 'output window, operand 0, single buffered']
    %7 = vsyncpa [#allocation3], 0
    %8 = vsyncpa [#allocation6], 0
    %9 = vsyncpa [#allocation4], 0
    // Predicated region
    $region2: #{tpu_custom_call.1} parent=1 // pred_check
      _
    $region3: #{tpu_custom_call.1} parent=1 // pred_check_branch
      %11 = sbr.rel (0) target = $region5
    $region4: #{tpu_custom_call.1} parent=1 // pred_region
      %s13 = ssub.s32 32, 32
      %14 = vsyncadd [#allocation3], %s13
      %s16 = sshll.u32 [#allocation2], 4
      %s17 = int_to_ptr.vmem [resolvable:$true] %s16
      %19 = dma.hbm_to_vmem [thread:$0]  %s0, 32, %s17, [#allocation3]
    $region5: #{tpu_custom_call.1} parent=1 // pred_fallthru
      _
    // Predicated region
    $region6: #{tpu_custom_call.1} parent=1 // pred_check
      _
    $region7: #{tpu_custom_call.1} parent=1 // pred_check_branch
      %21 = sbr.rel (0) target = $region9
    $region8: #{tpu_custom_call.1} parent=1 // pred_region
      %s23 = ssub.s32 2048, 2048
      %24 = vsyncadd [#allocation6], %s23
      %s25 = sshll.u32 [#allocation5], 4
      %s26 = int_to_ptr.vmem [resolvable:$true] %s25
      %31 = dma.hbm_to_vmem [thread:$0]  %s1, 2048, %s26, [#allocation6], 128, 128, 8
    $region9: #{tpu_custom_call.1} parent=1 // pred_fallthru
      _
    // Predicated region
    $region10: #{tpu_custom_call.1} parent=1 // pred_check
      _
    $region11: #{tpu_custom_call.1} parent=1 // pred_check_branch
      %33 = sbr.rel (0) target = $region13
    $region12: #{tpu_custom_call.1} parent=1 // pred_region
      %34 = dma.done [#allocation3], 32
    $region13: #{tpu_custom_call.1} parent=1 // pred_fallthru
      _
    // Predicated region
    $region14: #{tpu_custom_call.1} parent=1 // pred_check
      _
    $region15: #{tpu_custom_call.1} parent=1 // pred_check_branch
      %36 = sbr.rel (0) target = $region17
    $region16: #{tpu_custom_call.1} parent=1 // pred_region
      %37 = dma.done [#allocation6], 2048
    $region17: #{tpu_custom_call.1} parent=1 // pred_fallthru
      _
    %v38 = vld [vmem:[#allocation2] sm:$0x3]
    %v39 = vld [vmem:[#allocation5] sm:$0xff]
    %v40 = vld [vmem:[#allocation5 + $0x8] sm:$0xff]
    %v41 = vld [vmem:[#allocation5 + $0x10] sm:$0xff]
    %v42 = vld [vmem:[#allocation5 + $0x18] sm:$0xff]
    %v43 = vld [vmem:[#allocation5 + $0x20] sm:$0xff]
    %v44 = vld [vmem:[#allocation5 + $0x28] sm:$0xff]
    %v45 = vld [vmem:[#allocation5 + $0x30] sm:$0xff]
    %v46 = vld [vmem:[#allocation5 + $0x38] sm:$0xff]
    %v47 = vld [vmem:[#allocation5 + $0x40] sm:$0xff]
    %v48 = vld [vmem:[#allocation5 + $0x48] sm:$0xff]
    %v49 = vld [vmem:[#allocation5 + $0x50] sm:$0xff]
    %v50 = vld [vmem:[#allocation5 + $0x58] sm:$0xff]
    %v51 = vld [vmem:[#allocation5 + $0x60] sm:$0xff]
    %v52 = vld [vmem:[#allocation5 + $0x68] sm:$0xff]
    %v53 = vld [vmem:[#allocation5 + $0x70] sm:$0xff]
    %v54 = vld [vmem:[#allocation5 + $0x78] sm:$0xff]
    %55 = vmatprep.subr.mxu0 0.0
    %56 = vmatpush1.msra.mxu0 %v39
    %57 = vmatprep.subr.mxu0 0.0
    %58 = vmatpush1.msra.mxu0 %v40
    %59 = vmatprep.subr.mxu0 0.0
    %60 = vmatpush1.msra.mxu0 %v41
    %61 = vmatprep.subr.mxu0 0.0
    %62 = vmatpush1.msra.mxu0 %v42
    %63 = vmatprep.subr.mxu0 0.0
    %64 = vmatpush1.msra.mxu0 %v43
    %65 = vmatprep.subr.mxu0 0.0
    %66 = vmatpush1.msra.mxu0 %v44
    %67 = vmatprep.subr.mxu0 0.0
    %68 = vmatpush1.msra.mxu0 %v45
    %69 = vmatprep.subr.mxu0 0.0
    %70 = vmatpush1.msra.mxu0 %v46
    %71 = vmatprep.subr.mxu0 0.0
    %72 = vmatpush1.msra.mxu0 %v47
    %73 = vmatprep.subr.mxu0 0.0
    %74 = vmatpush1.msra.mxu0 %v48
    %75 = vmatprep.subr.mxu0 0.0
    %76 = vmatpush1.msra.mxu0 %v49
    %77 = vmatprep.subr.mxu0 0.0
    %78 = vmatpush1.msra.mxu0 %v50
    %79 = vmatprep.subr.mxu0 0.0
    %80 = vmatpush1.msra.mxu0 %v51
    %81 = vmatprep.subr.mxu0 0.0
    %82 = vmatpush1.msra.mxu0 %v52
    %83 = vmatprep.subr.mxu0 0.0
    %84 = vmatpush1.msra.mxu0 %v53
    %85 = vmatprep.subr.mxu0 0.0
    %86 = vmatpush1.msra.mxu0 %v54
    %87 = vmatprep.subr.mxu0 0.0
    %88 = vmatpush1.msra.mxu0 0.0
    %89 = vmatprep.subr.mxu0 0.0
    %90 = vmatpush1.msra.mxu0 0.0
    %91 = vmatprep.subr.mxu0 0.0
    %92 = vmatpush1.msra.mxu0 0.0
    %93 = vmatprep.subr.mxu0 0.0
    %94 = vmatpush1.msra.mxu0 0.0
    %95 = vmatprep.subr.mxu0 0.0
    %96 = vmatpush1.msra.mxu0 0.0
    %97 = vmatprep.subr.mxu0 0.0
    %98 = vmatpush1.msra.mxu0 0.0
    %99 = vmatprep.subr.mxu0 0.0
    %100 = vmatpush1.msra.mxu0 0.0
    %101 = vmatprep.subr.mxu0 0.0
    %102 = vmatpush1.msra.mxu0 0.0
    %103 = vmatprep.subr.mxu0 0.0
    %104 = vmatpush1.msra.mxu0 0.0
    %105 = vmatprep.subr.mxu0 0.0
    %106 = vmatpush1.msra.mxu0 0.0
    %107 = vmatprep.subr.mxu0 0.0
    %108 = vmatpush1.msra.mxu0 0.0
    %109 = vmatprep.subr.mxu0 0.0
    %110 = vmatpush1.msra.mxu0 0.0
    %111 = vmatprep.subr.mxu0 0.0
    %112 = vmatpush1.msra.mxu0 0.0
    %113 = vmatprep.subr.mxu0 0.0
    %114 = vmatpush1.msra.mxu0 0.0
    %115 = vmatprep.subr.mxu0 0.0
    %116 = vmatpush1.msra.mxu0 0.0
    %117 = vmatprep.subr.mxu0 0.0
    %118 = vmatpush1.msra.mxu0 0.0
    %119 = vmatprep.mubr.f32.mxu0 0.0
    %120 = vmatmul.mubr.f32.gmra.mrb[0].mxu0 %v38
    %v121 = vpop.f32.mrb[0].mxu0
    %v122 = vadd.f32 0.0, %v121
    %v123 = vpop.f32.mrb[0].mxu0
    %124 = vdwg.mxu0
    %125 = vst [vmem:[#allocation7] sm:$0x3] %v122
    // Predicated region
    $region18: #{tpu_custom_call.1} parent=1 // pred_check
      _
    $region19: #{tpu_custom_call.1} parent=1 // pred_check_branch
      %127 = sbr.rel (0) target = $region21
    $region20: #{tpu_custom_call.1} parent=1 // pred_region
      %s129 = ssub.s32 32, 32
      %130 = vsyncadd [#allocation4], %s129
      %s132 = sshll.u32 [#allocation7], 4
      %s133 = int_to_ptr.vmem [resolvable:$true] %s132
      %135 = dma.vmem_to_hbm [thread:$0]  %s133, 32, %s2, [#allocation4]
    $region21: #{tpu_custom_call.1} parent=1 // pred_fallthru
      _
    // Predicated region
    $region22: #{tpu_custom_call.1} parent=1 // pred_check
      _
    $region23: #{tpu_custom_call.1} parent=1 // pred_check_branch
      %137 = sbr.rel (0) target = $region25
    $region24: #{tpu_custom_call.1} parent=1 // pred_region
      %138 = dma.done [#allocation4], 32
    $region25: #{tpu_custom_call.1} parent=1 // pred_fallthru
      _
    %139 = vsyncpa [#allocation3], 1
    %140 = vsyncpa [#allocation6], 1
    %141 = vsyncpa [#allocation4], 1

</llo_original>
